<compile_context>
chip_gen: v7x
topology: tpu7x:2x2x1
jax: 0.10.0
libtpu: 0.0.40
codegen_flags: <defaults>
</compile_context>

<pallas_src>
import functools

import jax
import jax.numpy as jnp
from jax import lax
from jax.experimental import pallas as pl
from jax.experimental.pallas import tpu as pltpu

NEG_INF = -1e30  # large finite negative: avoids -inf - -inf = NaN corner cases


def qkv_proj_kernel(x_ref, w_ref, b_ref, q_ref, k_ref, v_ref):
    """x_ref: (tm, C); w_ref: (3, C, C) pre-transposed (x @ w_ref[i] == x @ W_i.T);
    b_ref: (3, 1, C); outputs q/k/v: (tm, C)."""
    x = x_ref[...]                       # storage dtype; MXU accumulates in f32
    for i, out_ref in enumerate((q_ref, k_ref, v_ref)):
        acc = jnp.dot(x, w_ref[i], preferred_element_type=jnp.float32)
        out_ref[...] = (acc + b_ref[i].astype(jnp.float32)).astype(out_ref.dtype)


def flash_attn_kernel(q_ref, k_ref, v_ref, o_ref, m_sc, l_sc, acc_sc, *, scale):
    """One (q-tile, kv-tile) step of causal flash attention for one batch row."""
    qi = pl.program_id(1)
    ki = pl.program_id(2)
    tq = q_ref.shape[1]
    tk = k_ref.shape[1]

    @pl.when(ki == 0)
    def _init():
        m_sc[...] = jnp.full_like(m_sc, NEG_INF)
        l_sc[...] = jnp.zeros_like(l_sc)
        acc_sc[...] = jnp.zeros_like(acc_sc)

    def _scores():
        # q @ k^T without materializing k.T: contract last dim of both operands.
        s = lax.dot_general(
            q_ref[0], k_ref[0],
            dimension_numbers=(((1,), (1,)), ((), ())),
            preferred_element_type=jnp.float32)
        return s * scale

    def _accumulate(s):
        m_prev = m_sc[...]
        m_new = jnp.maximum(m_prev, jnp.max(s, axis=-1, keepdims=True))
        alpha = jnp.exp(m_prev - m_new)
        p = jnp.exp(s - m_new)                                   # (tq, tk) f32
        l_sc[...] = alpha * l_sc[...] + jnp.sum(p, axis=-1, keepdims=True)
        acc_sc[...] = alpha * acc_sc[...] + jnp.dot(
            p.astype(v_ref.dtype), v_ref[0], preferred_element_type=jnp.float32)
        m_sc[...] = m_new

    @pl.when(ki < qi)          # strictly below the diagonal: no mask needed
    def _off_diag():
        _accumulate(_scores())

    @pl.when(ki == qi)         # diagonal tile: mask, accumulate, finalize
    def _diag():
        s = _scores()
        row = lax.broadcasted_iota(jnp.int32, (tq, tk), 0)
        col = lax.broadcasted_iota(jnp.int32, (tq, tk), 1)
        s = jnp.where(col <= row, s, NEG_INF)
        _accumulate(s)
        # Deferred normalization: one multiply per output element plus an EUP
        # reciprocal instead of a (tq, tk) divide per tile.
        o_ref[0] = (acc_sc[...] *
                    pl.reciprocal(l_sc[...], approx=True)).astype(o_ref.dtype)
    # Tiles with ki > qi are fully masked by causality -> no compute at all.


def self_attention(x, w, b):
    """x: (B, T, C); w: (3C, C) torch-Linear weight; b: (3C,) bias."""
    B, T, C = x.shape
    assert w.shape == (3 * C, C) and b.shape == (3 * C,)
    dtype = x.dtype

    # ---------------- QKV projection (rows of all batches folded) -----------
    M = B * T
    tm = 256 if M % 256 == 0 else M               # row tile
    x_rows = x.reshape(M, C)
    w3 = w.reshape(3, C, C).transpose(0, 2, 1)    # (3, C_in, C_out)
    b3 = b.reshape(3, 1, C)

    # Note: the constant-index weight block is tiny here; for very large C it
    # should be single-buffered (pipeline_mode=pl.Buffered(1)) and/or K-tiled.
    q, k, v = pl.pallas_call(
        qkv_proj_kernel,
        out_shape=tuple(jax.ShapeDtypeStruct((M, C), dtype) for _ in range(3)),
        grid_spec=pltpu.PrefetchScalarGridSpec(
            num_scalar_prefetch=0,
            grid=(M // tm,),
            in_specs=[
                pl.BlockSpec((tm, C), lambda i: (i, 0)),
                pl.BlockSpec((3, C, C), lambda i: (0, 0, 0)),
                pl.BlockSpec((3, 1, C), lambda i: (0, 0, 0)),
            ],
            out_specs=tuple(
                pl.BlockSpec((tm, C), lambda i: (i, 0)) for _ in range(3)),
        ),
        compiler_params=pltpu.CompilerParams(
            dimension_semantics=("parallel",),
            vmem_limit_bytes=64 * 1024 * 1024),
    )(x_rows, w3, b3)

    q = q.reshape(B, T, C)
    k = k.reshape(B, T, C)
    v = v.reshape(B, T, C)

    # ---------------- causal flash attention --------------------------------
    tq = 128 if T % 128 == 0 else T               # q/kv tile along the sequence
    nq = T // tq
    scale = 1.0 / (float(C) ** 0.5 + 1e-05)       # matches the PyTorch module

    return pl.pallas_call(
        functools.partial(flash_attn_kernel, scale=scale),
        out_shape=jax.ShapeDtypeStruct((B, T, C), dtype),
        grid_spec=pltpu.PrefetchScalarGridSpec(
            num_scalar_prefetch=0,
            grid=(B, nq, nq),                     # kv (reduction) axis last
            in_specs=[
                pl.BlockSpec((1, tq, C), lambda b, i, j: (b, i, 0)),   # q
                pl.BlockSpec((1, tq, C), lambda b, i, j: (b, j, 0)),   # k
                pl.BlockSpec((1, tq, C), lambda b, i, j: (b, j, 0)),   # v
            ],
            out_specs=pl.BlockSpec((1, tq, C), lambda b, i, j: (b, i, 0)),
            scratch_shapes=[
                pltpu.VMEM((tq, 1), jnp.float32),   # running max m
                pltpu.VMEM((tq, 1), jnp.float32),   # running denominator l
                pltpu.VMEM((tq, C), jnp.float32),   # unnormalized output acc
            ],
        ),
        compiler_params=pltpu.CompilerParams(
            dimension_semantics=("parallel", "parallel", "arbitrary"),
            vmem_limit_bytes=64 * 1024 * 1024),
    )(q, k, v)


def reference(x, w, b):
    """Pure-JAX reference mirroring the PyTorch forward."""
    B, T, C = x.shape
    qkv = x @ w.T + b
    q, k, v = jnp.split(qkv, 3, axis=-1)
    s = (q @ jnp.swapaxes(k, -2, -1)) / (C ** 0.5 + 1e-05)
    mask = jnp.tril(jnp.ones((T, T))) == 0
    s = jnp.where(mask, -jnp.inf, s)
    attn = jax.nn.softmax(s, axis=-1)
    return attn @ v


def _make_inputs(key, B, T, C, dtype=jnp.float32):
    kx, kw, kb = jax.random.split(key, 3)
    x = jax.random.normal(kx, (B, T, C), dtype=dtype)
    bound = 1.0 / (C ** 0.5)  # torch.nn.Linear default init bound
    w = jax.random.uniform(kw, (3 * C, C), minval=-bound, maxval=bound, dtype=dtype)
    b = jax.random.uniform(kb, (3 * C,), minval=-bound, maxval=bound, dtype=dtype)
    return x, w, b


if __name__ == "__main__":
    key = jax.random.PRNGKey(0)
    k1, k2 = jax.random.split(key)

    # (B=2, T=8, C=32): the small spec shape.  (2, 256, 128): exercises the
    # multi-tile grid, causal block skipping and the off-diagonal path.
    for kk, (B, T, C) in ((k1, (2, 8, 32)), (k2, (2, 256, 128))):
        x, w, b = _make_inputs(kk, B, T, C)
        out = jax.block_until_ready(self_attention(x, w, b))
        ref = reference(x, w, b)
        assert out.shape == (B, T, C)
        # Tolerance accounts for the approximate EUP reciprocal in the kernel.
        assert jnp.allclose(out, ref, atol=2e-2, rtol=2e-2), (
            float(jnp.max(jnp.abs(out - ref))))

    print("KERNEL_OK")
</pallas_src>

<mosaic_0001>
module attributes {stable_mosaic.version = 11 : i64} {
  func.func @qkv_proj_kernel(%arg0: i32, %arg1: memref<16x32xf32, #tpu.memory_space<vmem>>, %arg2: memref<3x32x32xf32, #tpu.memory_space<vmem>>, %arg3: memref<3x1x32xf32, #tpu.memory_space<vmem>>, %arg4: memref<16x32xf32, #tpu.memory_space<vmem>>, %arg5: memref<16x32xf32, #tpu.memory_space<vmem>>, %arg6: memref<16x32xf32, #tpu.memory_space<vmem>>) attributes {dimension_semantics = [#tpu.dimension_semantics<parallel>], iteration_bounds = array<i64: 1>, scalar_prefetch = 0 : i64, scratch_operands = 0 : i64, tpu.core_type = #tpu.core_type<tc>, window_params = [{transform_indices = @transform_0, window_bounds = array<i64: 16, 32>}, {pipeline_mode = #tpu.pipeline_mode<synchronous>, transform_indices = @transform_1, window_bounds = array<i64: 3, 32, 32>}, {pipeline_mode = #tpu.pipeline_mode<synchronous>, transform_indices = @transform_2, window_bounds = array<i64: 3, 1, 32>}, {transform_indices = @transform_3, window_bounds = array<i64: 16, 32>}, {transform_indices = @transform_4, window_bounds = array<i64: 16, 32>}, {transform_indices = @transform_5, window_bounds = array<i64: 16, 32>}]} {
    %c0 = arith.constant 0 : index
    %c0_0 = arith.constant 0 : index
    %0 = vector.load %arg1[%c0, %c0_0] : memref<16x32xf32, #tpu.memory_space<vmem>>, vector<16x32xf32>
    %c0_1 = arith.constant 0 : index
    %c0_2 = arith.constant 0 : index
    %c0_3 = arith.constant 0 : index
    %1 = vector.load %arg2[%c0_1, %c0_2, %c0_3] : memref<3x32x32xf32, #tpu.memory_space<vmem>>, vector<1x32x32xf32>
    %2 = vector.shape_cast %1 : vector<1x32x32xf32> to vector<32x32xf32>
    %cst = arith.constant dense<0.000000e+00> : vector<16x32xf32>
    %3 = tpu.matmul %0, %2, %cst {dimension_numbers = #tpu.dot_dimension_numbers<[1], [0], [0], [1], [0, 0, 1, 1], [], []>} : vector<16x32xf32>, vector<32x32xf32>, vector<16x32xf32> -> vector<16x32xf32>
    %c0_4 = arith.constant 0 : index
    %c0_5 = arith.constant 0 : index
    %c0_6 = arith.constant 0 : index
    %4 = vector.load %arg3[%c0_4, %c0_5, %c0_6] : memref<3x1x32xf32, #tpu.memory_space<vmem>>, vector<1x1x32xf32>
    %5 = vector.shape_cast %4 : vector<1x1x32xf32> to vector<1x32xf32>
    %6 = vector.broadcast %5 : vector<1x32xf32> to vector<16x32xf32>
    %7 = arith.addf %3, %6 : vector<16x32xf32>
    %c0_7 = arith.constant 0 : index
    %c0_8 = arith.constant 0 : index
    %8 = vector.load %arg4[%c0_7, %c0_8] : memref<16x32xf32, #tpu.memory_space<vmem>>, vector<16x32xf32>
    tpu.vector_store %arg4[%c0_7, %c0_8], %7 {strides = array<i32>} : memref<16x32xf32, #tpu.memory_space<vmem>>, vector<16x32xf32>,
    %c1 = arith.constant 1 : index
    %c0_9 = arith.constant 0 : index
    %c0_10 = arith.constant 0 : index
    %9 = vector.load %arg2[%c1, %c0_9, %c0_10] : memref<3x32x32xf32, #tpu.memory_space<vmem>>, vector<1x32x32xf32>
    %10 = vector.shape_cast %9 : vector<1x32x32xf32> to vector<32x32xf32>
    %cst_11 = arith.constant dense<0.000000e+00> : vector<16x32xf32>
    %11 = tpu.matmul %0, %10, %cst_11 {dimension_numbers = #tpu.dot_dimension_numbers<[1], [0], [0], [1], [0, 0, 1, 1], [], []>} : vector<16x32xf32>, vector<32x32xf32>, vector<16x32xf32> -> vector<16x32xf32>
    %c1_12 = arith.constant 1 : index
    %c0_13 = arith.constant 0 : index
    %c0_14 = arith.constant 0 : index
    %12 = vector.load %arg3[%c1_12, %c0_13, %c0_14] : memref<3x1x32xf32, #tpu.memory_space<vmem>>, vector<1x1x32xf32>
    %13 = vector.shape_cast %12 : vector<1x1x32xf32> to vector<1x32xf32>
    %14 = vector.broadcast %13 : vector<1x32xf32> to vector<16x32xf32>
    %15 = arith.addf %11, %14 : vector<16x32xf32>
    %c0_15 = arith.constant 0 : index
    %c0_16 = arith.constant 0 : index
    %16 = vector.load %arg5[%c0_15, %c0_16] : memref<16x32xf32, #tpu.memory_space<vmem>>, vector<16x32xf32>
    tpu.vector_store %arg5[%c0_15, %c0_16], %15 {strides = array<i32>} : memref<16x32xf32, #tpu.memory_space<vmem>>, vector<16x32xf32>,
    %c2 = arith.constant 2 : index
    %c0_17 = arith.constant 0 : index
    %c0_18 = arith.constant 0 : index
    %17 = vector.load %arg2[%c2, %c0_17, %c0_18] : memref<3x32x32xf32, #tpu.memory_space<vmem>>, vector<1x32x32xf32>
    %18 = vector.shape_cast %17 : vector<1x32x32xf32> to vector<32x32xf32>
    %cst_19 = arith.constant dense<0.000000e+00> : vector<16x32xf32>
    %19 = tpu.matmul %0, %18, %cst_19 {dimension_numbers = #tpu.dot_dimension_numbers<[1], [0], [0], [1], [0, 0, 1, 1], [], []>} : vector<16x32xf32>, vector<32x32xf32>, vector<16x32xf32> -> vector<16x32xf32>
    %c2_20 = arith.constant 2 : index
    %c0_21 = arith.constant 0 : index
    %c0_22 = arith.constant 0 : index
    %20 = vector.load %arg3[%c2_20, %c0_21, %c0_22] : memref<3x1x32xf32, #tpu.memory_space<vmem>>, vector<1x1x32xf32>
    %21 = vector.shape_cast %20 : vector<1x1x32xf32> to vector<1x32xf32>
    %22 = vector.broadcast %21 : vector<1x32xf32> to vector<16x32xf32>
    %23 = arith.addf %19, %22 : vector<16x32xf32>
    %c0_23 = arith.constant 0 : index
    %c0_24 = arith.constant 0 : index
    %24 = vector.load %arg6[%c0_23, %c0_24] : memref<16x32xf32, #tpu.memory_space<vmem>>, vector<16x32xf32>
    tpu.vector_store %arg6[%c0_23, %c0_24], %23 {strides = array<i32>} : memref<16x32xf32, #tpu.memory_space<vmem>>, vector<16x32xf32>,
    return
  }
  func.func @transform_0(%arg0: i32) -> (i32, i32) {
    %c0_i32 = arith.constant 0 : i32
    %c0_i32_0 = arith.constant 0 : i32
    return %arg0, %c0_i32 : i32, i32
  }
  func.func @transform_1(%arg0: i32) -> (i32, i32, i32) {
    %c0_i32 = arith.constant 0 : i32
    %c0_i32_0 = arith.constant 0 : i32
    %c0_i32_1 = arith.constant 0 : i32
    %c0_i32_2 = arith.constant 0 : i32
    return %c0_i32, %c0_i32_0, %c0_i32_1 : i32, i32, i32
  }
  func.func @transform_2(%arg0: i32) -> (i32, i32, i32) {
    %c0_i32 = arith.constant 0 : i32
    %c0_i32_0 = arith.constant 0 : i32
    %c0_i32_1 = arith.constant 0 : i32
    %c0_i32_2 = arith.constant 0 : i32
    return %c0_i32, %c0_i32_0, %c0_i32_1 : i32, i32, i32
  }
  func.func @transform_3(%arg0: i32) -> (i32, i32) {
    %c0_i32 = arith.constant 0 : i32
    %c0_i32_0 = arith.constant 0 : i32
    return %arg0, %c0_i32 : i32, i32
  }
  func.func @transform_4(%arg0: i32) -> (i32, i32) {
    %c0_i32 = arith.constant 0 : i32
    %c0_i32_0 = arith.constant 0 : i32
    return %arg0, %c0_i32 : i32, i32
  }
  func.func @transform_5(%arg0: i32) -> (i32, i32) {
    %c0_i32 = arith.constant 0 : i32
    %c0_i32_0 = arith.constant 0 : i32
    return %arg0, %c0_i32 : i32, i32
  }
}

</mosaic_0001>

<llo_original>
// kernel: tpu_custom_call.1
$region0: #{tpu_custom_call.1}
  #allocation0 [shape = 'u32[]', space=smem, size = 0x4, offset = 0x4, fixed_abs, tag = 'smem constant byte address 0x4 - core index']
  #allocation1 [shape = 'u32[144,128]{1,0:T(1,128)}', space=vmem, size = 0x12000, scoped, tag = 'internal scratch']
  %s0 = inlined_call_operand.hbm [shape: f32[16,32], index: 0, kind: input, shape index: {}]
  %s1 = inlined_call_operand.hbm [shape: f32[3,32,32], index: 1, kind: input, shape index: {}]
  %s2 = inlined_call_operand.hbm [shape: f32[3,1,32], index: 2, kind: input, shape index: {}]
  %s3 = inlined_call_operand.hbm [shape: f32[16,32], index: 3, kind: output, shape index: {0}]
  %s4 = inlined_call_operand.hbm [shape: f32[16,32], index: 4, kind: output, shape index: {1}]
  %s5 = inlined_call_operand.hbm [shape: f32[16,32], index: 5, kind: output, shape index: {2}]
  %6 = xla_tuple %s3, %s4, %s5
  %s7 = sld [smem:[#allocation0]]
  $region50: #{tpu_custom_call.1} parent=0
    _
  %s9 = ssub.s32 1, %s7
  %s10 = scalar_select 0, %s9, %s7
  $region1: #{tpu_custom_call.1} parent=0
    #allocation2 [shape = 'u8[8192]{0}', space=vmem, size = 0x2000, scoped, tag = 'input window, operand 0, single buffered']
    #allocation3 [shape = 's32[1]{0}', space=sflag, size = 0x4, scoped, tag = 'scoped memory for tpu_custom_call.1']
    #allocation4 [shape = 's32[1]{0}', space=sflag, size = 0x4, scoped, tag = 'scoped memory for tpu_custom_call.1']
    #allocation5 [shape = 'u8[49152]{0}', space=vmem, size = 0xc000, scoped, tag = 'input window, operand 1, single buffered']
    #allocation6 [shape = 's32[1]{0}', space=sflag, size = 0x4, scoped, tag = 'scoped memory for tpu_custom_call.1']
    #allocation7 [shape = 'u8[1536]{0}', space=vmem, size = 0x800, scoped, tag = 'input window, operand 2, single buffered']
    #allocation8 [shape = 'u8[8192]{0}', space=vmem, size = 0x2000, scoped, tag = 'output window, operand 0, single buffered']
    #allocation9 [shape = 'u8[8192]{0}', space=vmem, size = 0x2000, scoped, tag = 'output window, operand 1, single buffered']
    #allocation10 [shape = 's32[1]{0}', space=sflag, size = 0x4, scoped, tag = 'scoped memory for tpu_custom_call.1']
    #allocation11 [shape = 'u8[8192]{0}', space=vmem, size = 0x2000, scoped, tag = 'output window, operand 2, single buffered']
    %11 = vsyncpa [#allocation3], 0
    %12 = vsyncpa [#allocation6], 0
    %13 = vsyncpa [#allocation4], 0
    %14 = vsyncpa [#allocation10], 0
    // Predicated region
    $region2: #{tpu_custom_call.1} parent=1 // pred_check
      _
    $region3: #{tpu_custom_call.1} parent=1 // pred_check_branch
      %16 = sbr.rel (0) target = $region5
    $region4: #{tpu_custom_call.1} parent=1 // pred_region
      %s18 = ssub.s32 256, 256
      %19 = vsyncadd [#allocation3], %s18
      %s20 = sshll.u32 [#allocation2], 4
      %s21 = int_to_ptr.vmem [resolvable:$true] %s20
      %26 = dma.hbm_to_vmem [thread:$0]  %s0, 256, %s21, [#allocation3], 128, 128, 8
    $region5: #{tpu_custom_call.1} parent=1 // pred_fallthru
      _
    // Predicated region
    $region6: #{tpu_custom_call.1} parent=1 // pred_check
      _
    $region7: #{tpu_custom_call.1} parent=1 // pred_check_branch
      %28 = sbr.rel (0) target = $region9
    $region8: #{tpu_custom_call.1} parent=1 // pred_region
      %s30 = ssub.s32 1536, 1536
      %31 = vsyncadd [#allocation6], %s30
      %s32 = sshll.u32 [#allocation5], 4
      %s33 = int_to_ptr.vmem [resolvable:$true] %s32
      %38 = dma.hbm_to_vmem [thread:$0]  %s1, 1536, %s33, [#allocation6], 128, 128, 8
    $region9: #{tpu_custom_call.1} parent=1 // pred_fallthru
      _
    // Predicated region
    $region10: #{tpu_custom_call.1} parent=1 // pred_check
      _
    $region11: #{tpu_custom_call.1} parent=1 // pred_check_branch
      %40 = sbr.rel (0) target = $region13
    $region12: #{tpu_custom_call.1} parent=1 // pred_region
      %s42 = ssub.s32 48, 48
      %43 = vsyncadd [#allocation6], %s42
      %s44 = sshll.u32 [#allocation7], 4
      %s45 = int_to_ptr.vmem [resolvable:$true] %s44
      %50 = dma.hbm_to_vmem [thread:$0]  %s2, 48, %s45, [#allocation6], 16, 16, 1
    $region13: #{tpu_custom_call.1} parent=1 // pred_fallthru
      _
    // Predicated region
    $region14: #{tpu_custom_call.1} parent=1 // pred_check
      _
    $region15: #{tpu_custom_call.1} parent=1 // pred_check_branch
      %52 = sbr.rel (0) target = $region17
    $region16: #{tpu_custom_call.1} parent=1 // pred_region
      %53 = dma.done [#allocation3], 256
    $region17: #{tpu_custom_call.1} parent=1 // pred_fallthru
      _
    // Predicated region
    $region18: #{tpu_custom_call.1} parent=1 // pred_check
      _
    $region19: #{tpu_custom_call.1} parent=1 // pred_check_branch
      %55 = sbr.rel (0) target = $region21
    $region20: #{tpu_custom_call.1} parent=1 // pred_region
      %56 = dma.done [#allocation6], 1536
    $region21: #{tpu_custom_call.1} parent=1 // pred_fallthru
      _
    // Predicated region
    $region22: #{tpu_custom_call.1} parent=1 // pred_check
      _
    $region23: #{tpu_custom_call.1} parent=1 // pred_check_branch
      %58 = sbr.rel (0) target = $region25
    $region24: #{tpu_custom_call.1} parent=1 // pred_region
      %59 = dma.done [#allocation6], 48
    $region25: #{tpu_custom_call.1} parent=1 // pred_fallthru
      _
    %v60 = vld [vmem:[#allocation2] sm:$0xff]
    %v61 = vld [vmem:[#allocation2 + $0x8] sm:$0xff]
    %v62 = vld [vmem:[#allocation5] sm:$0xff]
    %v63 = vld [vmem:[#allocation5 + $0x8] sm:$0xff]
    %v64 = vld [vmem:[#allocation5 + $0x10] sm:$0xff]
    %v65 = vld [vmem:[#allocation5 + $0x18] sm:$0xff]
    %v66 = vld [vmem:[#allocation7] sm:$0x1]
    %v68 = vlaneseq
    %v69 = vshrl.u32 %v68, 7
    %v70 = vsub.s32 0, %v69
    %v71 = vrot.slane %v66, %v70
    %vm73 = vcmask 261120
    %v75 = vsel %vm73, %v60, 0
    %v78 = vsel %vm73, %v61, 0
    %80 = vmatprep.subr.mxu0 0.0
    %81 = vmatpush1.msra.mxu0 %v62
    %82 = vmatprep.subr.mxu0 0.0
    %83 = vmatpush1.msra.mxu0 %v63
    %84 = vmatprep.subr.mxu0 0.0
    %85 = vmatpush1.msra.mxu0 %v64
    %86 = vmatprep.subr.mxu0 0.0
    %87 = vmatpush1.msra.mxu0 %v65
    %88 = vmatprep.subr.mxu0 0.0
    %89 = vmatpush1.msra.mxu0 0.0
    %90 = vmatprep.subr.mxu0 0.0
    %91 = vmatpush1.msra.mxu0 0.0
    %92 = vmatprep.subr.mxu0 0.0
    %93 = vmatpush1.msra.mxu0 0.0
    %94 = vmatprep.subr.mxu0 0.0
    %95 = vmatpush1.msra.mxu0 0.0
    %96 = vmatprep.subr.mxu0 0.0
    %97 = vmatpush1.msra.mxu0 0.0
    %98 = vmatprep.subr.mxu0 0.0
    %99 = vmatpush1.msra.mxu0 0.0
    %100 = vmatprep.subr.mxu0 0.0
    %101 = vmatpush1.msra.mxu0 0.0
    %102 = vmatprep.subr.mxu0 0.0
    %103 = vmatpush1.msra.mxu0 0.0
    %104 = vmatprep.subr.mxu0 0.0
    %105 = vmatpush1.msra.mxu0 0.0
    %106 = vmatprep.subr.mxu0 0.0
    %107 = vmatpush1.msra.mxu0 0.0
    %108 = vmatprep.subr.mxu0 0.0
    %109 = vmatpush1.msra.mxu0 0.0
    %110 = vmatprep.subr.mxu0 0.0
    %111 = vmatpush1.msra.mxu0 0.0
    %112 = vmatprep.subr.mxu0 0.0
    %113 = vmatpush1.msra.mxu0 0.0
    %114 = vmatprep.subr.mxu0 0.0
    %115 = vmatpush1.msra.mxu0 0.0
    %116 = vmatprep.subr.mxu0 0.0
    %117 = vmatpush1.msra.mxu0 0.0
    %118 = vmatprep.subr.mxu0 0.0
    %119 = vmatpush1.msra.mxu0 0.0
    %120 = vmatprep.subr.mxu0 0.0
    %121 = vmatpush1.msra.mxu0 0.0
    %122 = vmatprep.subr.mxu0 0.0
    %123 = vmatpush1.msra.mxu0 0.0
    %124 = vmatprep.subr.mxu0 0.0
    %125 = vmatpush1.msra.mxu0 0.0
    %126 = vmatprep.subr.mxu0 0.0
    %127 = vmatpush1.msra.mxu0 0.0
    %128 = vmatprep.subr.mxu0 0.0
    %129 = vmatpush1.msra.mxu0 0.0
    %130 = vmatprep.subr.mxu0 0.0
    %131 = vmatpush1.msra.mxu0 0.0
    %132 = vmatprep.subr.mxu0 0.0
    %133 = vmatpush1.msra.mxu0 0.0
    %134 = vmatprep.subr.mxu0 0.0
    %135 = vmatpush1.msra.mxu0 0.0
    %136 = vmatprep.subr.mxu0 0.0
    %137 = vmatpush1.msra.mxu0 0.0
    %138 = vmatprep.subr.mxu0 0.0
    %139 = vmatpush1.msra.mxu0 0.0
    %140 = vmatprep.subr.mxu0 0.0
    %141 = vmatpush1.msra.mxu0 0.0
    %142 = vmatprep.subr.mxu0 0.0
    %143 = vmatpush1.msra.mxu0 0.0
    %144 = vmatprep.mubr.f32.mxu0 0.0
    %145 = vmatmul.mubr.f32.gmra.mrb[0].mxu0 %v75
    %v146 = vpop.f32.mrb[0].mxu0
    %v147 = vadd.f32 %v71, %v146
    %v148 = vpop.f32.mrb[0].mxu0
    %149 = vmatprep.mubr.f32.mxu0 0.0
    %150 = vmatmul.mubr.f32.gmra.mrb[0].mxu0 %v78
    %v151 = vpop.f32.mrb[0].mxu0
    %v152 = vadd.f32 %v71, %v151
    %v153 = vpop.f32.mrb[0].mxu0
    %154 = vdwg.mxu0
    %155 = vst.msk [vmem:[#allocation8] sm:$0xff] %vm73, %v147
    %156 = vst.msk [vmem:[#allocation8 + $0x8] sm:$0xff] %vm73, %v152
    %s157 = scalar_lea.vmem [#allocation5], 32
    %v158 = vld [vmem:[%s157] sm:$0xff]
    %v159 = vld [vmem:[%s157 + $0x8] sm:$0xff]
    %v160 = vld [vmem:[%s157 + $0x10] sm:$0xff]
    %v161 = vld [vmem:[%s157 + $0x18] sm:$0xff]
    %s162 = scalar_lea.vmem [#allocation7], 1
    %v163 = vld [vmem:[%s162] sm:$0x1]
    %v165 = vlaneseq
    %v166 = vshrl.u32 %v165, 7
    %v167 = vsub.s32 0, %v166
    %v168 = vrot.slane %v163, %v167
    %170 = vmatprep.subr.mxu0 0.0
    %171 = vmatpush1.msra.mxu0 %v158
    %172 = vmatprep.subr.mxu0 0.0
    %173 = vmatpush1.msra.mxu0 %v159
    %174 = vmatprep.subr.mxu0 0.0
    %175 = vmatpush1.msra.mxu0 %v160
    %176 = vmatprep.subr.mxu0 0.0
    %177 = vmatpush1.msra.mxu0 %v161
    %178 = vmatprep.subr.mxu0 0.0
    %179 = vmatpush1.msra.mxu0 0.0
    %180 = vmatprep.subr.mxu0 0.0
    %181 = vmatpush1.msra.mxu0 0.0
    %182 = vmatprep.subr.mxu0 0.0
    %183 = vmatpush1.msra.mxu0 0.0
    %184 = vmatprep.subr.mxu0 0.0
    %185 = vmatpush1.msra.mxu0 0.0
    %186 = vmatprep.subr.mxu0 0.0
    %187 = vmatpush1.msra.mxu0 0.0
    %188 = vmatprep.subr.mxu0 0.0
    %189 = vmatpush1.msra.mxu0 0.0
    %190 = vmatprep.subr.mxu0 0.0
    %191 = vmatpush1.msra.mxu0 0.0
    %192 = vmatprep.subr.mxu0 0.0
    %193 = vmatpush1.msra.mxu0 0.0
    %194 = vmatprep.subr.mxu0 0.0
    %195 = vmatpush1.msra.mxu0 0.0
    %196 = vmatprep.subr.mxu0 0.0
    %197 = vmatpush1.msra.mxu0 0.0
    %198 = vmatprep.subr.mxu0 0.0
    %199 = vmatpush1.msra.mxu0 0.0
    %200 = vmatprep.subr.mxu0 0.0
    %201 = vmatpush1.msra.mxu0 0.0
    %202 = vmatprep.subr.mxu0 0.0
    %203 = vmatpush1.msra.mxu0 0.0
    %204 = vmatprep.subr.mxu0 0.0
    %205 = vmatpush1.msra.mxu0 0.0
    %206 = vmatprep.subr.mxu0 0.0
    %207 = vmatpush1.msra.mxu0 0.0
    %208 = vmatprep.subr.mxu0 0.0
    %209 = vmatpush1.msra.mxu0 0.0
    %210 = vmatprep.subr.mxu0 0.0
    %211 = vmatpush1.msra.mxu0 0.0
    %212 = vmatprep.subr.mxu0 0.0
    %213 = vmatpush1.msra.mxu0 0.0
    %214 = vmatprep.subr.mxu0 0.0
    %215 = vmatpush1.msra.mxu0 0.0
    %216 = vmatprep.subr.mxu0 0.0
    %217 = vmatpush1.msra.mxu0 0.0
    %218 = vmatprep.subr.mxu0 0.0
    %219 = vmatpush1.msra.mxu0 0.0
    %220 = vmatprep.subr.mxu0 0.0
    %221 = vmatpush1.msra.mxu0 0.0
    %222 = vmatprep.subr.mxu0 0.0
    %223 = vmatpush1.msra.mxu0 0.0
    %224 = vmatprep.subr.mxu0 0.0
    %225 = vmatpush1.msra.mxu0 0.0
    %226 = vmatprep.subr.mxu0 0.0
    %227 = vmatpush1.msra.mxu0 0.0
    %228 = vmatprep.subr.mxu0 0.0
    %229 = vmatpush1.msra.mxu0 0.0
    %230 = vmatprep.subr.mxu0 0.0
    %231 = vmatpush1.msra.mxu0 0.0
    %232 = vmatprep.subr.mxu0 0.0
    %233 = vmatpush1.msra.mxu0 0.0
    %234 = vmatprep.mubr.f32.mxu0 0.0
    %235 = vmatmul.mubr.f32.gmra.mrb[0].mxu0 %v75
    %v236 = vpop.f32.mrb[0].mxu0
    %v237 = vadd.f32 %v168, %v236
    %v238 = vpop.f32.mrb[0].mxu0
    %239 = vmatprep.mubr.f32.mxu0 0.0
    %240 = vmatmul.mubr.f32.gmra.mrb[0].mxu0 %v78
    %v241 = vpop.f32.mrb[0].mxu0
    %v242 = vadd.f32 %v168, %v241
    %v243 = vpop.f32.mrb[0].mxu0
    %244 = vdwg.mxu0
    %245 = vst.msk [vmem:[#allocation9] sm:$0xff] %vm73, %v237
    %246 = vst.msk [vmem:[#allocation9 + $0x8] sm:$0xff] %vm73, %v242
    %s247 = scalar_lea.vmem [#allocation5], 64
    %v248 = vld [vmem:[%s247] sm:$0xff]
    %v249 = vld [vmem:[%s247 + $0x8] sm:$0xff]
    %v250 = vld [vmem:[%s247 + $0x10] sm:$0xff]
    %v251 = vld [vmem:[%s247 + $0x18] sm:$0xff]
    %s252 = scalar_lea.vmem [#allocation7], 2
    %v253 = vld [vmem:[%s252] sm:$0x1]
    %v255 = vlaneseq
    %v256 = vshrl.u32 %v255, 7
    %v257 = vsub.s32 0, %v256
    %v258 = vrot.slane %v253, %v257
    %260 = vmatprep.subr.mxu0 0.0
    %261 = vmatpush1.msra.mxu0 %v248
    %262 = vmatprep.subr.mxu0 0.0
    %263 = vmatpush1.msra.mxu0 %v249
    %264 = vmatprep.subr.mxu0 0.0
    %265 = vmatpush1.msra.mxu0 %v250
    %266 = vmatprep.subr.mxu0 0.0
    %267 = vmatpush1.msra.mxu0 %v251
    %268 = vmatprep.subr.mxu0 0.0
    %269 = vmatpush1.msra.mxu0 0.0
    %270 = vmatprep.subr.mxu0 0.0
    %271 = vmatpush1.msra.mxu0 0.0
    %272 = vmatprep.subr.mxu0 0.0
    %273 = vmatpush1.msra.mxu0 0.0
    %274 = vmatprep.subr.mxu0 0.0
    %275 = vmatpush1.msra.mxu0 0.0
    %276 = vmatprep.subr.mxu0 0.0
    %277 = vmatpush1.msra.mxu0 0.0
    %278 = vmatprep.subr.mxu0 0.0
    %279 = vmatpush1.msra.mxu0 0.0
    %280 = vmatprep.subr.mxu0 0.0
    %281 = vmatpush1.msra.mxu0 0.0
    %282 = vmatprep.subr.mxu0 0.0
    %283 = vmatpush1.msra.mxu0 0.0
    %284 = vmatprep.subr.mxu0 0.0
    %285 = vmatpush1.msra.mxu0 0.0
    %286 = vmatprep.subr.mxu0 0.0
    %287 = vmatpush1.msra.mxu0 0.0
    %288 = vmatprep.subr.mxu0 0.0
    %289 = vmatpush1.msra.mxu0 0.0
    %290 = vmatprep.subr.mxu0 0.0
    %291 = vmatpush1.msra.mxu0 0.0
    %292 = vmatprep.subr.mxu0 0.0
    %293 = vmatpush1.msra.mxu0 0.0
    %294 = vmatprep.subr.mxu0 0.0
    %295 = vmatpush1.msra.mxu0 0.0
    %296 = vmatprep.subr.mxu0 0.0
    %297 = vmatpush1.msra.mxu0 0.0
    %298 = vmatprep.subr.mxu0 0.0
    %299 = vmatpush1.msra.mxu0 0.0
    %300 = vmatprep.subr.mxu0 0.0
    %301 = vmatpush1.msra.mxu0 0.0
    %302 = vmatprep.subr.mxu0 0.0
    %303 = vmatpush1.msra.mxu0 0.0
    %304 = vmatprep.subr.mxu0 0.0
    %305 = vmatpush1.msra.mxu0 0.0
    %306 = vmatprep.subr.mxu0 0.0
    %307 = vmatpush1.msra.mxu0 0.0
    %308 = vmatprep.subr.mxu0 0.0
    %309 = vmatpush1.msra.mxu0 0.0
    %310 = vmatprep.subr.mxu0 0.0
    %311 = vmatpush1.msra.mxu0 0.0
    %312 = vmatprep.subr.mxu0 0.0
    %313 = vmatpush1.msra.mxu0 0.0
    %314 = vmatprep.subr.mxu0 0.0
    %315 = vmatpush1.msra.mxu0 0.0
    %316 = vmatprep.subr.mxu0 0.0
    %317 = vmatpush1.msra.mxu0 0.0
    %318 = vmatprep.subr.mxu0 0.0
    %319 = vmatpush1.msra.mxu0 0.0
    %320 = vmatprep.subr.mxu0 0.0
    %321 = vmatpush1.msra.mxu0 0.0
    %322 = vmatprep.subr.mxu0 0.0
    %323 = vmatpush1.msra.mxu0 0.0
    %324 = vmatprep.mubr.f32.mxu0 0.0
    %325 = vmatmul.mubr.f32.gmra.mrb[0].mxu0 %v75
    %v326 = vpop.f32.mrb[0].mxu0
    %v327 = vadd.f32 %v258, %v326
    %v328 = vpop.f32.mrb[0].mxu0
    %329 = vmatprep.mubr.f32.mxu0 0.0
    %330 = vmatmul.mubr.f32.gmra.mrb[0].mxu0 %v78
    %v331 = vpop.f32.mrb[0].mxu0
    %v332 = vadd.f32 %v258, %v331
    %v333 = vpop.f32.mrb[0].mxu0
    %334 = vdwg.mxu0
    %335 = vst.msk [vmem:[#allocation11] sm:$0xff] %vm73, %v327
    %336 = vst.msk [vmem:[#allocation11 + $0x8] sm:$0xff] %vm73, %v332
    // Predicated region
    $region26: #{tpu_custom_call.1} parent=1 // pred_check
      _
    $region27: #{tpu_custom_call.1} parent=1 // pred_check_branch
      %338 = sbr.rel (0) target = $region29
    $region28: #{tpu_custom_call.1} parent=1 // pred_region
      %s340 = ssub.s32 256, 256
      %341 = vsyncadd [#allocation4], %s340
      %s342 = sshll.u32 [#allocation8], 4
      %s343 = int_to_ptr.vmem [resolvable:$true] %s342
      %348 = dma.vmem_to_hbm [thread:$0]  %s343, 256, %s3, [#allocation4], 128, 128, 8
    $region29: #{tpu_custom_call.1} parent=1 // pred_fallthru
      _
    // Predicated region
    $region30: #{tpu_custom_call.1} parent=1 // pred_check
      _
    $region31: #{tpu_custom_call.1} parent=1 // pred_check_branch
      %350 = sbr.rel (0) target = $region33
    $region32: #{tpu_custom_call.1} parent=1 // pred_region
      %s352 = ssub.s32 256, 256
      %353 = vsyncadd [#allocation10], %s352
      %s354 = sshll.u32 [#allocation9], 4
      %s355 = int_to_ptr.vmem [resolvable:$true] %s354
      %360 = dma.vmem_to_hbm [thread:$0]  %s355, 256, %s4, [#allocation10], 128, 128, 8
    $region33: #{tpu_custom_call.1} parent=1 // pred_fallthru
      _
    // Predicated region
    $region34: #{tpu_custom_call.1} parent=1 // pred_check
      _
    $region35: #{tpu_custom_call.1} parent=1 // pred_check_branch
      %362 = sbr.rel (0) target = $region37
    $region36: #{tpu_custom_call.1} parent=1 // pred_region
      %s364 = ssub.s32 256, 256
      %365 = vsyncadd [#allocation10], %s364
      %s366 = sshll.u32 [#allocation11], 4
      %s367 = int_to_ptr.vmem [resolvable:$true] %s366
      %372 = dma.vmem_to_hbm [thread:$0]  %s367, 256, %s5, [#allocation10], 128, 128, 8
    $region37: #{tpu_custom_call.1} parent=1 // pred_fallthru
      _
    // Predicated region
    $region38: #{tpu_custom_call.1} parent=1 // pred_check
      _
    $region39: #{tpu_custom_call.1} parent=1 // pred_check_branch
      %374 = sbr.rel (0) target = $region41
    $region40: #{tpu_custom_call.1} parent=1 // pred_region
      %375 = dma.done [#allocation4], 256
    $region41: #{tpu_custom_call.1} parent=1 // pred_fallthru
      _
    // Predicated region
    $region42: #{tpu_custom_call.1} parent=1 // pred_check
      _
    $region43: #{tpu_custom_call.1} parent=1 // pred_check_branch
      %377 = sbr.rel (0) target = $region45
    $region44: #{tpu_custom_call.1} parent=1 // pred_region
      %378 = dma.done [#allocation10], 256
    $region45: #{tpu_custom_call.1} parent=1 // pred_fallthru
      _
    // Predicated region
    $region46: #{tpu_custom_call.1} parent=1 // pred_check
      _
    $region47: #{tpu_custom_call.1} parent=1 // pred_check_branch
      %380 = sbr.rel (0) target = $region49
    $region48: #{tpu_custom_call.1} parent=1 // pred_region
      %381 = dma.done [#allocation10], 256
    $region49: #{tpu_custom_call.1} parent=1 // pred_fallthru
      _
    %382 = vsyncpa [#allocation3], 1
    %383 = vsyncpa [#allocation6], 1
    %384 = vsyncpa [#allocation4], 1
    %385 = vsyncpa [#allocation10], 1

</llo_original>
